<compile_context>
chip_gen: v5e
topology: v5e:2x2
jax: 0.10.0
libtpu: 0.0.40
codegen_flags: <defaults>
</compile_context>

<pallas_src>
import functools

import jax
import jax.numpy as jnp
from jax import lax
from jax.experimental import pallas as pl
from jax.experimental.pallas import tpu as pltpu

_LANES = 128
_SUBLANES = 8
_CHUNK_ROWS = 128            # 128x128 f32 chunk = 16 vregs -> no spills
_MAX_BLOCK_ROWS = 4096       # 4096x128 f32 = 2 MiB/input; 2 in x 2 buf = 8 MiB
_VMEM_LIMIT_BYTES = 32 * 1024 * 1024


def _round_up(x: int, m: int) -> int:
    return ((x + m - 1) // m) * m


def _l1_sum_kernel(o_ref, t_ref, out_ref, acc_ref, *, rows, block_rows,
                   steps_per_partial, need_mask):
    """Accumulate sum(|o - t|) into an (8, 128) f32 VMEM accumulator."""
    p = pl.program_id(0)   # "parallel" partial-sum axis (megacore split on v7x)
    s = pl.program_id(1)   # sequential (reduction) axis

    @pl.when(s == 0)
    def _init():
        acc_ref[...] = jnp.zeros_like(acc_ref)

    n_chunks = block_rows // _CHUNK_ROWS

    def _block_sum(mask_base=None):
        # Chunked accumulation: stream 128-row slices so live values stay in
        # ~16 vregs (no block-sized f32/int32 intermediates -> no VMEM spills).
        def body(c, carry):
            r0 = pl.multiple_of(c * _CHUNK_ROWS, _CHUNK_ROWS)
            o = o_ref[pl.ds(r0, _CHUNK_ROWS), :].astype(jnp.float32)
            t = t_ref[pl.ds(r0, _CHUNK_ROWS), :].astype(jnp.float32)
            d = jnp.abs(o - t)
            if mask_base is not None:
                # Ragged / padded block: zero rows whose global index >= rows.
                row_ids = lax.broadcasted_iota(jnp.int32, d.shape, 0)
                valid = (mask_base + r0 + row_ids) < rows
                d = jnp.where(valid, d, 0.0)
            # (chunk, 128) -> (8, 128) partial sums: pure vreg adds (VPU only).
            return carry + jnp.sum(d.reshape(-1, _SUBLANES, _LANES), axis=0)

        return lax.fori_loop(0, n_chunks, body,
                             jnp.zeros((_SUBLANES, _LANES), jnp.float32),
                             unroll=True)

    if need_mask:
        gb = p * steps_per_partial + s            # global block index
        is_full = (gb + 1) * block_rows <= rows   # all rows valid?

        @pl.when(is_full)
        def _full():
            acc_ref[...] += _block_sum()

        @pl.when(jnp.logical_not(is_full))
        def _ragged():
            acc_ref[...] += _block_sum(mask_base=gb * block_rows)
    else:
        acc_ref[...] += _block_sum()

    @pl.when(s == pl.num_programs(1) - 1)
    def _finalize():
        out_ref[...] = acc_ref[...].reshape(out_ref.shape)


def l1_loss(output: jax.Array, target: jax.Array) -> jax.Array:
    """Mean absolute error over all elements (PyTorch nn.L1Loss default)."""
    assert output.shape == target.shape, "output/target shapes must match"
    n = output.size
    if n == 0:
        # torch mean-of-empty returns NaN.
        return jnp.float32(float("nan"))

    o = output.reshape(-1)
    t = target.reshape(-1)

    rows = n // _LANES
    rem = n - rows * _LANES

    # <=127-element tail handled with plain jnp (tiny); no full-array jnp.pad.
    tail_sum = jnp.float32(0.0)
    if rem:
        o_tail = o[rows * _LANES:].astype(jnp.float32)
        t_tail = t[rows * _LANES:].astype(jnp.float32)
        tail_sum = jnp.sum(jnp.abs(o_tail - t_tail))

    if rows == 0:
        return tail_sum / jnp.float32(n)

    # 128-aligned prefix as a lane-dense (rows, 128) slab. Zero-copy when
    # rem == 0; for ragged n XLA may materialize the prefix slice once.
    o2 = o[: rows * _LANES].reshape(rows, _LANES)
    t2 = t[: rows * _LANES].reshape(rows, _LANES)

    block_rows = min(_MAX_BLOCK_ROWS, _round_up(rows, _CHUNK_ROWS))
    steps_total = pl.cdiv(rows, block_rows)

    # Unconditional two-partial split whenever there is >1 block: each partial
    # covers a block-aligned half of the row range (possibly uneven); padded /
    # ragged blocks are fully masked in-kernel.  2x on v7x (2 TCs), no-op on
    # single-core v5e/v6e.
    num_partials = 2 if steps_total >= 2 else 1
    steps = pl.cdiv(steps_total, num_partials)
    need_mask = (num_partials * steps * block_rows) != rows

    kernel = functools.partial(
        _l1_sum_kernel, rows=rows, block_rows=block_rows,
        steps_per_partial=steps, need_mask=need_mask)

    last_block = steps_total - 1

    def in_map(p_, s_):
        # Clamp so padded steps (uneven split) re-read the last block; their
        # contribution is zeroed by the in-kernel mask.
        return (jnp.minimum(p_ * steps + s_, last_block), 0)

    in_spec = pl.BlockSpec((block_rows, _LANES), in_map)

    partials = pl.pallas_call(
        kernel,
        out_shape=jax.ShapeDtypeStruct((num_partials, _SUBLANES, _LANES),
                                       jnp.float32),
        grid_spec=pltpu.PrefetchScalarGridSpec(
            num_scalar_prefetch=0,
            grid=(num_partials, steps),
            in_specs=[in_spec, in_spec],
            out_specs=pl.BlockSpec((1, _SUBLANES, _LANES),
                                   lambda p_, s_: (p_, 0, 0)),
            scratch_shapes=[pltpu.VMEM((_SUBLANES, _LANES), jnp.float32)],
        ),
        compiler_params=pltpu.CompilerParams(
            dimension_semantics=("parallel", "arbitrary"),
            vmem_limit_bytes=_VMEM_LIMIT_BYTES,
        ),
    )(o2, t2)

    # Single cross-lane reduce of the f32 partial sums + mean, outside the
    # kernel.  (Returned in f32 regardless of input dtype for accuracy.)
    return (jnp.sum(partials) + tail_sum) / jnp.float32(n)


if __name__ == "__main__":
    key = jax.random.PRNGKey(0)
    k_out, k_tgt = jax.random.split(key)

    def check(shape, rtol=1e-4, atol=1e-6):
        o = jax.random.normal(k_out, shape, dtype=jnp.float32)
        t = jax.random.normal(k_tgt, shape, dtype=jnp.float32)
        loss = l1_loss(o, t)
        jax.block_until_ready(loss)
        ref = jnp.mean(jnp.abs(o - t))
        assert jnp.allclose(loss, ref, rtol=rtol, atol=atol), (shape, loss, ref)

    # Primary check: small shape consistent with the module (single ragged block).
    check((2, 4, 16, 16))
    # Tiny shape (< 128 elements): pure host-side tail path.
    check((3, 5, 7))
    # Ragged lane tail (n % 128 != 0) plus a ragged in-kernel block.
    check((5, 1000))
    # Multi-block shape: exercises the two-partial split + uneven/ragged masking.
    check((40, 128, 129))

    print("KERNEL_OK")
</pallas_src>

<mosaic_0001>
module attributes {stable_mosaic.version = 11 : i64} {
  func.func @_l1_sum_kernel(%arg0: i32, %arg1: i32, %arg2: memref<128x128xf32, #tpu.memory_space<vmem>>, %arg3: memref<128x128xf32, #tpu.memory_space<vmem>>, %arg4: memref<1x8x128xf32, #tpu.memory_space<vmem>>, %arg5: memref<8x128xf32, #tpu.memory_space<vmem>>) attributes {dimension_semantics = [#tpu.dimension_semantics<parallel>, #tpu.dimension_semantics<arbitrary>], iteration_bounds = array<i64: 1, 1>, scalar_prefetch = 0 : i64, scratch_operands = 1 : i64, tpu.core_type = #tpu.core_type<tc>, window_params = [{transform_indices = @transform_0, window_bounds = array<i64: 128, 128>}, {transform_indices = @transform_1, window_bounds = array<i64: 128, 128>}, {transform_indices = @transform_2, window_bounds = array<i64: 1, 8, 128>}]} {
    %c0_i32 = arith.constant 0 : i32
    %0 = arith.cmpi eq, %arg1, %c0_i32 : i32
    %1 = arith.extui %0 : i1 to i32
    %c0_i32_0 = arith.constant 0 : i32
    %2 = arith.cmpi ne, %1, %c0_i32_0 : i32
    scf.if %2 {
      %cst = arith.constant 0.000000e+00 : f32
      %16 = vector.broadcast %cst : f32 to vector<8x128xf32>
      %c0 = arith.constant 0 : index
      %c0_6 = arith.constant 0 : index
      %17 = vector.load %arg5[%c0, %c0_6] : memref<8x128xf32, #tpu.memory_space<vmem>>, vector<8x128xf32>
      tpu.vector_store %arg5[%c0, %c0_6], %16 {strides = array<i32>} : memref<8x128xf32, #tpu.memory_space<vmem>>, vector<8x128xf32>,
    } else {
    }
    %c1_i32 = arith.constant 1 : i32
    %3 = arith.muli %arg0, %c1_i32 : i32
    %4 = arith.addi %3, %arg1 : i32
    %c1_i32_1 = arith.constant 1 : i32
    %5 = arith.addi %4, %c1_i32_1 : i32
    %c128_i32 = arith.constant 128 : i32
    %6 = arith.muli %5, %c128_i32 : i32
    %c16_i32 = arith.constant 16 : i32
    %7 = arith.cmpi sle, %6, %c16_i32 : i32
    %8 = arith.extui %7 : i1 to i32
    %c0_i32_2 = arith.constant 0 : i32
    %9 = arith.cmpi ne, %8, %c0_i32_2 : i32
    scf.if %9 {
      %c0 = arith.constant 0 : index
      %c0_6 = arith.constant 0 : index
      %16 = vector.load %arg5[%c0, %c0_6] : memref<8x128xf32, #tpu.memory_space<vmem>>, vector<8x128xf32>
      %cst = arith.constant 0.000000e+00 : f32
      %17 = vector.broadcast %cst : f32 to vector<8x128xf32>
      %c0_i32_7 = arith.constant 0 : i32
      %c128_i32_8 = arith.constant 128 : i32
      %18 = arith.muli %c0_i32_7, %c128_i32_8 : i32
      %19 = tpu.assume_multiple %18, 128 : i32
      %20 = arith.index_cast %19 : i32 to index
      %c0_9 = arith.constant 0 : index
      %21 = vector.load %arg2[%20, %c0_9] : memref<128x128xf32, #tpu.memory_space<vmem>>, vector<128x128xf32>
      %22 = arith.index_cast %19 : i32 to index
      %c0_10 = arith.constant 0 : index
      %23 = vector.load %arg3[%22, %c0_10] : memref<128x128xf32, #tpu.memory_space<vmem>>, vector<128x128xf32>
      %24 = arith.subf %21, %23 : vector<128x128xf32>
      %25 = math.absf %24 : vector<128x128xf32>
      %26 = vector.shape_cast %25 : vector<128x128xf32> to vector<16x8x128xf32>
      %cst_11 = arith.constant dense<0.000000e+00> : vector<8x128xf32>
      %27 = vector.multi_reduction <add>, %26, %cst_11 [0] : vector<16x8x128xf32> to vector<8x128xf32>
      %28 = arith.addf %17, %27 : vector<8x128xf32>
      %c1_i32_12 = arith.constant 1 : i32
      %29 = arith.addf %16, %28 : vector<8x128xf32>
      %c0_13 = arith.constant 0 : index
      %c0_14 = arith.constant 0 : index
      %30 = vector.load %arg5[%c0_13, %c0_14] : memref<8x128xf32, #tpu.memory_space<vmem>>, vector<8x128xf32>
      tpu.vector_store %arg5[%c0_13, %c0_14], %29 {strides = array<i32>} : memref<8x128xf32, #tpu.memory_space<vmem>>, vector<8x128xf32>,
    } else {
    }
    %true = arith.constant true
    %10 = arith.xori %7, %true : i1
    %11 = arith.extui %10 : i1 to i32
    %c0_i32_3 = arith.constant 0 : i32
    %12 = arith.cmpi ne, %11, %c0_i32_3 : i32
    scf.if %12 {
      %c0 = arith.constant 0 : index
      %c0_6 = arith.constant 0 : index
      %16 = vector.load %arg5[%c0, %c0_6] : memref<8x128xf32, #tpu.memory_space<vmem>>, vector<8x128xf32>
      %c128_i32_7 = arith.constant 128 : i32
      %17 = arith.muli %4, %c128_i32_7 : i32
      %cst = arith.constant 0.000000e+00 : f32
      %18 = vector.broadcast %cst : f32 to vector<8x128xf32>
      %c0_i32_8 = arith.constant 0 : i32
      %c128_i32_9 = arith.constant 128 : i32
      %19 = arith.muli %c0_i32_8, %c128_i32_9 : i32
      %20 = tpu.assume_multiple %19, 128 : i32
      %21 = arith.index_cast %20 : i32 to index
      %c0_10 = arith.constant 0 : index
      %22 = vector.load %arg2[%21, %c0_10] : memref<128x128xf32, #tpu.memory_space<vmem>>, vector<128x128xf32>
      %23 = arith.index_cast %20 : i32 to index
      %c0_11 = arith.constant 0 : index
      %24 = vector.load %arg3[%23, %c0_11] : memref<128x128xf32, #tpu.memory_space<vmem>>, vector<128x128xf32>
      %25 = arith.subf %22, %24 : vector<128x128xf32>
      %26 = math.absf %25 : vector<128x128xf32>
      %27 = tpu.iota {dimensions = array<i32: 0>} : vector<128x128xi32>
      %28 = arith.addi %17, %20 : i32
      %29 = vector.broadcast %28 : i32 to vector<128x128xi32>
      %30 = arith.addi %29, %27 : vector<128x128xi32>
      %c16_i32_12 = arith.constant 16 : i32
      %31 = vector.broadcast %c16_i32_12 : i32 to vector<128x128xi32>
      %32 = arith.cmpi slt, %30, %31 : vector<128x128xi32>
      %cst_13 = arith.constant 0.000000e+00 : f32
      %33 = vector.broadcast %cst_13 : f32 to vector<128x128xf32>
      %34 = arith.select %32, %26, %33 : vector<128x128xi1>, vector<128x128xf32>
      %35 = vector.shape_cast %34 : vector<128x128xf32> to vector<16x8x128xf32>
      %cst_14 = arith.constant dense<0.000000e+00> : vector<8x128xf32>
      %36 = vector.multi_reduction <add>, %35, %cst_14 [0] : vector<16x8x128xf32> to vector<8x128xf32>
      %37 = arith.addf %18, %36 : vector<8x128xf32>
      %c1_i32_15 = arith.constant 1 : i32
      %38 = arith.addf %16, %37 : vector<8x128xf32>
      %c0_16 = arith.constant 0 : index
      %c0_17 = arith.constant 0 : index
      %39 = vector.load %arg5[%c0_16, %c0_17] : memref<8x128xf32, #tpu.memory_space<vmem>>, vector<8x128xf32>
      tpu.vector_store %arg5[%c0_16, %c0_17], %38 {strides = array<i32>} : memref<8x128xf32, #tpu.memory_space<vmem>>, vector<8x128xf32>,
    } else {
    }
    %c0_i32_4 = arith.constant 0 : i32
    %13 = arith.cmpi eq, %arg1, %c0_i32_4 : i32
    %14 = arith.extui %13 : i1 to i32
    %c0_i32_5 = arith.constant 0 : i32
    %15 = arith.cmpi ne, %14, %c0_i32_5 : i32
    scf.if %15 {
      %c0 = arith.constant 0 : index
      %c0_6 = arith.constant 0 : index
      %16 = vector.load %arg5[%c0, %c0_6] : memref<8x128xf32, #tpu.memory_space<vmem>>, vector<8x128xf32>
      %17 = vector.shape_cast %16 : vector<8x128xf32> to vector<1x8x128xf32>
      %c0_7 = arith.constant 0 : index
      %c0_8 = arith.constant 0 : index
      %c0_9 = arith.constant 0 : index
      %18 = vector.load %arg4[%c0_7, %c0_8, %c0_9] : memref<1x8x128xf32, #tpu.memory_space<vmem>>, vector<1x8x128xf32>
      tpu.vector_store %arg4[%c0_7, %c0_8, %c0_9], %17 {strides = array<i32>} : memref<1x8x128xf32, #tpu.memory_space<vmem>>, vector<1x8x128xf32>,
    } else {
    }
    return
  }
  func.func @transform_0(%arg0: i32, %arg1: i32) -> (i32, i32) {
    %c1_i32 = arith.constant 1 : i32
    %0 = arith.muli %arg0, %c1_i32 : i32
    %1 = arith.addi %0, %arg1 : i32
    %c0_i32 = arith.constant 0 : i32
    %2 = arith.minsi %1, %c0_i32 : i32
    %c0_i32_0 = arith.constant 0 : i32
    %c0_i32_1 = arith.constant 0 : i32
    return %2, %c0_i32_0 : i32, i32
  }
  func.func @transform_1(%arg0: i32, %arg1: i32) -> (i32, i32) {
    %c1_i32 = arith.constant 1 : i32
    %0 = arith.muli %arg0, %c1_i32 : i32
    %1 = arith.addi %0, %arg1 : i32
    %c0_i32 = arith.constant 0 : i32
    %2 = arith.minsi %1, %c0_i32 : i32
    %c0_i32_0 = arith.constant 0 : i32
    %c0_i32_1 = arith.constant 0 : i32
    return %2, %c0_i32_0 : i32, i32
  }
  func.func @transform_2(%arg0: i32, %arg1: i32) -> (i32, i32, i32) {
    %c0_i32 = arith.constant 0 : i32
    %c0_i32_0 = arith.constant 0 : i32
    %c0_i32_1 = arith.constant 0 : i32
    return %arg0, %c0_i32, %c0_i32_0 : i32, i32, i32
  }
}

</mosaic_0001>

<llo_original>
// kernel: tpu_custom_call.1
$region0: #{tpu_custom_call.1}
  #allocation0 [shape = 'u32[]', space=smem, size = 0x4, offset = 0x4, fixed_abs, tag = 'smem constant byte address 0x4 - core index']
  #allocation1 [shape = 'u32[72,128]{1,0:T(1,128)}', space=vmem, size = 0x9000, scoped, tag = 'internal scratch']
  #allocation2 [shape = 'f32[8,128]{1,0:T(8,128)}', space=vmem, size = 0x1000, scoped, tag = 'scratch operand']
  %s0 = inlined_call_operand.hbm [shape: f32[16,128], index: 0, kind: input, shape index: {}]
  %s1 = inlined_call_operand.hbm [shape: f32[16,128], index: 1, kind: input, shape index: {}]
  %s2 = inlined_call_operand.hbm [shape: f32[1,8,128], index: 2, kind: output, shape index: {}]
  %s3 = sld [smem:[#allocation0]]
  $region42: #{tpu_custom_call.1} parent=0
    _
  %s5 = ssub.s32 1, %s3
  %s6 = scalar_select 0, %s5, %s3
  $region1: #{tpu_custom_call.1} parent=0
    #allocation3 [shape = 'u8[65536]{0}', space=vmem, size = 0x10000, scoped, tag = 'input window, operand 0, single buffered']
    #allocation4 [shape = 's32[1]{0}', space=sflag, size = 0x4, scoped, tag = 'scoped memory for tpu_custom_call.1']
    #allocation5 [shape = 's32[1]{0}', space=sflag, size = 0x4, scoped, tag = 'scoped memory for tpu_custom_call.1']
    #allocation6 [shape = 'u8[65536]{0}', space=vmem, size = 0x10000, scoped, tag = 'input window, operand 1, single buffered']
    #allocation7 [shape = 's32[1]{0}', space=sflag, size = 0x4, scoped, tag = 'scoped memory for tpu_custom_call.1']
    #allocation8 [shape = 'u8[4096]{0}', space=vmem, size = 0x1000, scoped, tag = 'output window, operand 0, single buffered']
    %7 = vsyncpa [#allocation4], 0
    %8 = vsyncpa [#allocation7], 0
    %9 = vsyncpa [#allocation5], 0
    // Predicated region
    $region2: #{tpu_custom_call.1} parent=1 // pred_check
      _
    $region3: #{tpu_custom_call.1} parent=1 // pred_check_branch
      %11 = sbr.rel (0) target = $region5
    $region4: #{tpu_custom_call.1} parent=1 // pred_region
      %s12 = sadd.s32 0, 0
      %p13 = scmp.lt.s32.totalorder %s12, 0
      %s14 = scalar_select %p13, %s12, 0
      %s15 = smul.u32 16, %s14
      %s16 = ssub.s32 2, %s15
      %s17 = smul.u32 8, %s16
      %s18 = ssub.s32 128, %s17
      %s19 = sshll.u32 %s18, 4
      %20 = vsyncadd [#allocation4], %s19
      %p21 = scmp.ne.s32.totalorder 0, %s17
      %s22 = smul.addr %s15, 8
      %s23 = scalar_lea.hbm %s0, %s22
      %s24 = smul.u32 8, %s16
      %s25 = sshll.u32 %s23, 4
      %s26 = int_to_ptr.hbm [resolvable:$true] %s25
      %s27 = sshll.u32 [#allocation3], 4
      %s28 = int_to_ptr.vmem [resolvable:$true] %s27
      %s29 = sshll.u32 %s24, 4
      %33 = dma.hbm_to_vmem [thread:$0]  (%p21), %s26, %s29, %s28, [#allocation4], 128, 128, 8
    $region5: #{tpu_custom_call.1} parent=1 // pred_fallthru
      _
    // Predicated region
    $region6: #{tpu_custom_call.1} parent=1 // pred_check
      _
    $region7: #{tpu_custom_call.1} parent=1 // pred_check_branch
      %35 = sbr.rel (0) target = $region9
    $region8: #{tpu_custom_call.1} parent=1 // pred_region
      %s36 = sadd.s32 0, 0
      %p37 = scmp.lt.s32.totalorder %s36, 0
      %s38 = scalar_select %p37, %s36, 0
      %s39 = smul.u32 16, %s38
      %s40 = ssub.s32 2, %s39
      %s41 = smul.u32 8, %s40
      %s42 = ssub.s32 128, %s41
      %s43 = sshll.u32 %s42, 4
      %44 = vsyncadd [#allocation7], %s43
      %p45 = scmp.ne.s32.totalorder 0, %s41
      %s46 = smul.addr %s39, 8
      %s47 = scalar_lea.hbm %s1, %s46
      %s48 = smul.u32 8, %s40
      %s49 = sshll.u32 %s47, 4
      %s50 = int_to_ptr.hbm [resolvable:$true] %s49
      %s51 = sshll.u32 [#allocation6], 4
      %s52 = int_to_ptr.vmem [resolvable:$true] %s51
      %s53 = sshll.u32 %s48, 4
      %57 = dma.hbm_to_vmem [thread:$0]  (%p45), %s50, %s53, %s52, [#allocation7], 128, 128, 8
    $region9: #{tpu_custom_call.1} parent=1 // pred_fallthru
      _
    // Predicated region
    $region10: #{tpu_custom_call.1} parent=1 // pred_check
      _
    $region11: #{tpu_custom_call.1} parent=1 // pred_check_branch
      %59 = sbr.rel (0) target = $region13
    $region12: #{tpu_custom_call.1} parent=1 // pred_region
      %61 = dma.done [#allocation4], 2048
    $region13: #{tpu_custom_call.1} parent=1 // pred_fallthru
      _
    // Predicated region
    $region14: #{tpu_custom_call.1} parent=1 // pred_check
      _
    $region15: #{tpu_custom_call.1} parent=1 // pred_check_branch
      %63 = sbr.rel (0) target = $region17
    $region16: #{tpu_custom_call.1} parent=1 // pred_region
      %65 = dma.done [#allocation7], 2048
    $region17: #{tpu_custom_call.1} parent=1 // pred_fallthru
      _
    %s66 = sadd.s32 0, 0
    %p67 = scmp.lt.s32.totalorder %s66, 0
    %s68 = scalar_select %p67, %s66, 0
    %s69 = smul.u32 16, %s68
    %s70 = ssub.s32 2, %s69
    %s71 = smul.u32 8, %s70
    %s72 = sadd.s32 0, 0
    %p73 = scmp.lt.s32.totalorder %s72, 0
    %s74 = scalar_select %p73, %s72, 0
    %s75 = smul.u32 16, %s74
    %s76 = ssub.s32 2, %s75
    %s77 = smul.u32 8, %s76
    %p78 = scmp.eq.s32.totalorder 0, 0
    // Predicated region
    $region18: #{tpu_custom_call.1} parent=1 // pred_check
      %p79 = pneg %p78
    $region19: #{tpu_custom_call.1} parent=1 // pred_check_branch
      %81 = sbr.rel (%p79) target = $region21
    $region20: #{tpu_custom_call.1} parent=1 // pred_region
      %82 = vst [vmem:[#allocation2] sm:$0xff] 0.0
    $region21: #{tpu_custom_call.1} parent=1 // pred_fallthru
      _
    %s83 = sadd.s32 0, 0
    %s84 = sadd.s32 %s83, 1
    %s85 = smul.u32 %s84, 128
    %p86 = scmp.le.s32.totalorder %s85, 16
    // Predicated region
    $region22: #{tpu_custom_call.1} parent=1 // pred_check
      %p87 = pneg %p86
    $region23: #{tpu_custom_call.1} parent=1 // pred_check_branch
      %89 = sbr.rel (%p87) target = $region25
    $region24: #{tpu_custom_call.1} parent=1 // pred_region
      %v90 = vld [vmem:[#allocation2] sm:$0xff]
      %v91 = vld [vmem:[#allocation3] sm:$0xff]
      %v92 = vld [vmem:[#allocation3 + $0x8] sm:$0xff]
      %v93 = vld [vmem:[#allocation3 + $0x10] sm:$0xff]
      %v94 = vld [vmem:[#allocation3 + $0x18] sm:$0xff]
      %v95 = vld [vmem:[#allocation3 + $0x20] sm:$0xff]
      %v96 = vld [vmem:[#allocation3 + $0x28] sm:$0xff]
      %v97 = vld [vmem:[#allocation3 + $0x30] sm:$0xff]
      %v98 = vld [vmem:[#allocation3 + $0x38] sm:$0xff]
      %v99 = vld [vmem:[#allocation3 + $0x40] sm:$0xff]
      %v100 = vld [vmem:[#allocation3 + $0x48] sm:$0xff]
      %v101 = vld [vmem:[#allocation3 + $0x50] sm:$0xff]
      %v102 = vld [vmem:[#allocation3 + $0x58] sm:$0xff]
      %v103 = vld [vmem:[#allocation3 + $0x60] sm:$0xff]
      %v104 = vld [vmem:[#allocation3 + $0x68] sm:$0xff]
      %v105 = vld [vmem:[#allocation3 + $0x70] sm:$0xff]
      %v106 = vld [vmem:[#allocation3 + $0x78] sm:$0xff]
      %v107 = vld [vmem:[#allocation6] sm:$0xff]
      %v108 = vld [vmem:[#allocation6 + $0x8] sm:$0xff]
      %v109 = vld [vmem:[#allocation6 + $0x10] sm:$0xff]
      %v110 = vld [vmem:[#allocation6 + $0x18] sm:$0xff]
      %v111 = vld [vmem:[#allocation6 + $0x20] sm:$0xff]
      %v112 = vld [vmem:[#allocation6 + $0x28] sm:$0xff]
      %v113 = vld [vmem:[#allocation6 + $0x30] sm:$0xff]
      %v114 = vld [vmem:[#allocation6 + $0x38] sm:$0xff]
      %v115 = vld [vmem:[#allocation6 + $0x40] sm:$0xff]
      %v116 = vld [vmem:[#allocation6 + $0x48] sm:$0xff]
      %v117 = vld [vmem:[#allocation6 + $0x50] sm:$0xff]
      %v118 = vld [vmem:[#allocation6 + $0x58] sm:$0xff]
      %v119 = vld [vmem:[#allocation6 + $0x60] sm:$0xff]
      %v120 = vld [vmem:[#allocation6 + $0x68] sm:$0xff]
      %v121 = vld [vmem:[#allocation6 + $0x70] sm:$0xff]
      %v122 = vld [vmem:[#allocation6 + $0x78] sm:$0xff]
      %v123 = vsub.f32 %v91, %v107
      %v124 = vsub.f32 %v92, %v108
      %v125 = vsub.f32 %v93, %v109
      %v126 = vsub.f32 %v94, %v110
      %v127 = vsub.f32 %v95, %v111
      %v128 = vsub.f32 %v96, %v112
      %v129 = vsub.f32 %v97, %v113
      %v130 = vsub.f32 %v98, %v114
      %v131 = vsub.f32 %v99, %v115
      %v132 = vsub.f32 %v100, %v116
      %v133 = vsub.f32 %v101, %v117
      %v134 = vsub.f32 %v102, %v118
      %v135 = vsub.f32 %v103, %v119
      %v136 = vsub.f32 %v104, %v120
      %v137 = vsub.f32 %v105, %v121
      %v138 = vsub.f32 %v106, %v122
      %v139 = vand.u32 2147483647, %v123
      %v140 = vand.u32 2147483647, %v124
      %v141 = vand.u32 2147483647, %v125
      %v142 = vand.u32 2147483647, %v126
      %v143 = vand.u32 2147483647, %v127
      %v144 = vand.u32 2147483647, %v128
      %v145 = vand.u32 2147483647, %v129
      %v146 = vand.u32 2147483647, %v130
      %v147 = vand.u32 2147483647, %v131
      %v148 = vand.u32 2147483647, %v132
      %v149 = vand.u32 2147483647, %v133
      %v150 = vand.u32 2147483647, %v134
      %v151 = vand.u32 2147483647, %v135
      %v152 = vand.u32 2147483647, %v136
      %v153 = vand.u32 2147483647, %v137
      %v154 = vand.u32 2147483647, %v138
      %v155 = vadd.f32 %v139, %v140
      %v156 = vadd.f32 %v155, %v141
      %v157 = vadd.f32 %v156, %v142
      %v158 = vadd.f32 %v157, %v143
      %v159 = vadd.f32 %v158, %v144
      %v160 = vadd.f32 %v159, %v145
      %v161 = vadd.f32 %v160, %v146
      %v162 = vadd.f32 %v161, %v147
      %v163 = vadd.f32 %v162, %v148
      %v164 = vadd.f32 %v163, %v149
      %v165 = vadd.f32 %v164, %v150
      %v166 = vadd.f32 %v165, %v151
      %v167 = vadd.f32 %v166, %v152
      %v168 = vadd.f32 %v167, %v153
      %v169 = vadd.f32 %v168, %v154
      %v170 = vadd.f32 %v169, 0.0
      %v171 = vadd.f32 %v90, %v170
      %172 = vst [vmem:[#allocation2] sm:$0xff] %v171
    $region25: #{tpu_custom_call.1} parent=1 // pred_fallthru
      _
    %p173 = scmp.gt.s32.totalorder %s85, 16
    // Predicated region
    $region26: #{tpu_custom_call.1} parent=1 // pred_check
      %p174 = pneg %p173
    $region27: #{tpu_custom_call.1} parent=1 // pred_check_branch
      %176 = sbr.rel (%p174) target = $region29
    $region28: #{tpu_custom_call.1} parent=1 // pred_region
      %v177 = vld [vmem:[#allocation2] sm:$0xff]
      %s178 = smul.u32 %s83, 128
      %v179 = vld [vmem:[#allocation3] sm:$0xff]
      %v180 = vld [vmem:[#allocation3 + $0x8] sm:$0xff]
      %v181 = vld [vmem:[#allocation3 + $0x10] sm:$0xff]
      %v182 = vld [vmem:[#allocation3 + $0x18] sm:$0xff]
      %v183 = vld [vmem:[#allocation3 + $0x20] sm:$0xff]
      %v184 = vld [vmem:[#allocation3 + $0x28] sm:$0xff]
      %v185 = vld [vmem:[#allocation3 + $0x30] sm:$0xff]
      %v186 = vld [vmem:[#allocation3 + $0x38] sm:$0xff]
      %v187 = vld [vmem:[#allocation3 + $0x40] sm:$0xff]
      %v188 = vld [vmem:[#allocation3 + $0x48] sm:$0xff]
      %v189 = vld [vmem:[#allocation3 + $0x50] sm:$0xff]
      %v190 = vld [vmem:[#allocation3 + $0x58] sm:$0xff]
      %v191 = vld [vmem:[#allocation3 + $0x60] sm:$0xff]
      %v192 = vld [vmem:[#allocation3 + $0x68] sm:$0xff]
      %v193 = vld [vmem:[#allocation3 + $0x70] sm:$0xff]
      %v194 = vld [vmem:[#allocation3 + $0x78] sm:$0xff]
      %v195 = vld [vmem:[#allocation6] sm:$0xff]
      %v196 = vld [vmem:[#allocation6 + $0x8] sm:$0xff]
      %v197 = vld [vmem:[#allocation6 + $0x10] sm:$0xff]
      %v198 = vld [vmem:[#allocation6 + $0x18] sm:$0xff]
      %v199 = vld [vmem:[#allocation6 + $0x20] sm:$0xff]
      %v200 = vld [vmem:[#allocation6 + $0x28] sm:$0xff]
      %v201 = vld [vmem:[#allocation6 + $0x30] sm:$0xff]
      %v202 = vld [vmem:[#allocation6 + $0x38] sm:$0xff]
      %v203 = vld [vmem:[#allocation6 + $0x40] sm:$0xff]
      %v204 = vld [vmem:[#allocation6 + $0x48] sm:$0xff]
      %v205 = vld [vmem:[#allocation6 + $0x50] sm:$0xff]
      %v206 = vld [vmem:[#allocation6 + $0x58] sm:$0xff]
      %v207 = vld [vmem:[#allocation6 + $0x60] sm:$0xff]
      %v208 = vld [vmem:[#allocation6 + $0x68] sm:$0xff]
      %v209 = vld [vmem:[#allocation6 + $0x70] sm:$0xff]
      %v210 = vld [vmem:[#allocation6 + $0x78] sm:$0xff]
      %v211 = vsub.f32 %v179, %v195
      %v212 = vsub.f32 %v180, %v196
      %v213 = vsub.f32 %v181, %v197
      %v214 = vsub.f32 %v182, %v198
      %v215 = vsub.f32 %v183, %v199
      %v216 = vsub.f32 %v184, %v200
      %v217 = vsub.f32 %v185, %v201
      %v218 = vsub.f32 %v186, %v202
      %v219 = vsub.f32 %v187, %v203
      %v220 = vsub.f32 %v188, %v204
      %v221 = vsub.f32 %v189, %v205
      %v222 = vsub.f32 %v190, %v206
      %v223 = vsub.f32 %v191, %v207
      %v224 = vsub.f32 %v192, %v208
      %v225 = vsub.f32 %v193, %v209
      %v226 = vsub.f32 %v194, %v210
      %v227 = vand.u32 2147483647, %v211
      %v228 = vand.u32 2147483647, %v212
      %v229 = vand.u32 2147483647, %v213
      %v230 = vand.u32 2147483647, %v214
      %v231 = vand.u32 2147483647, %v215
      %v232 = vand.u32 2147483647, %v216
      %v233 = vand.u32 2147483647, %v217
      %v234 = vand.u32 2147483647, %v218
      %v235 = vand.u32 2147483647, %v219
      %v236 = vand.u32 2147483647, %v220
      %v237 = vand.u32 2147483647, %v221
      %v238 = vand.u32 2147483647, %v222
      %v239 = vand.u32 2147483647, %v223
      %v240 = vand.u32 2147483647, %v224
      %v241 = vand.u32 2147483647, %v225
      %v242 = vand.u32 2147483647, %v226
      %v243 = vlaneseq
      %v244 = vshrl.u32 %v243, 7
      %v245 = vadd.s32 %v244, 8
      %v246 = vadd.s32 %v244, 16
      %v247 = vadd.s32 %v244, 24
      %v248 = vadd.s32 %v244, 32
      %v249 = vadd.s32 %v244, 40
      %v250 = vadd.s32 %v244, 48
      %v251 = vadd.s32 %v244, 56
      %v252 = vadd.s32 %v244, 64
      %v253 = vadd.s32 %v244, 72
      %v254 = vadd.s32 %v244, 80
      %v255 = vadd.s32 %v244, 88
      %v256 = vadd.s32 %v244, 96
      %v257 = vadd.s32 %v244, 104
      %v258 = vadd.s32 %v244, 112
      %v259 = vadd.s32 %v244, 120
      %s260 = sadd.s32 %s178, 0
      %v261 = vstv %s260
      %v262 = vadd.s32 %v261, %v244
      %v263 = vadd.s32 %v261, %v245
      %v264 = vadd.s32 %v261, %v246
      %v265 = vadd.s32 %v261, %v247
      %v266 = vadd.s32 %v261, %v248
      %v267 = vadd.s32 %v261, %v249
      %v268 = vadd.s32 %v261, %v250
      %v269 = vadd.s32 %v261, %v251
      %v270 = vadd.s32 %v261, %v252
      %v271 = vadd.s32 %v261, %v253
      %v272 = vadd.s32 %v261, %v254
      %v273 = vadd.s32 %v261, %v255
      %v274 = vadd.s32 %v261, %v256
      %v275 = vadd.s32 %v261, %v257
      %v276 = vadd.s32 %v261, %v258
      %v277 = vadd.s32 %v261, %v259
      %vm278 = vcmp.lt.s32.totalorder %v262, 16
      %vm279 = vcmp.lt.s32.totalorder %v263, 16
      %vm280 = vcmp.lt.s32.totalorder %v264, 16
      %vm281 = vcmp.lt.s32.totalorder %v265, 16
      %vm282 = vcmp.lt.s32.totalorder %v266, 16
      %vm283 = vcmp.lt.s32.totalorder %v267, 16
      %vm284 = vcmp.lt.s32.totalorder %v268, 16
      %vm285 = vcmp.lt.s32.totalorder %v269, 16
      %vm286 = vcmp.lt.s32.totalorder %v270, 16
      %vm287 = vcmp.lt.s32.totalorder %v271, 16
      %vm288 = vcmp.lt.s32.totalorder %v272, 16
      %vm289 = vcmp.lt.s32.totalorder %v273, 16
      %vm290 = vcmp.lt.s32.totalorder %v274, 16
      %vm291 = vcmp.lt.s32.totalorder %v275, 16
      %vm292 = vcmp.lt.s32.totalorder %v276, 16
      %vm293 = vcmp.lt.s32.totalorder %v277, 16
      %v294 = vsel %vm278, %v227, 0.0
      %v295 = vsel %vm279, %v228, 0.0
      %v296 = vsel %vm280, %v229, 0.0
      %v297 = vsel %vm281, %v230, 0.0
      %v298 = vsel %vm282, %v231, 0.0
      %v299 = vsel %vm283, %v232, 0.0
      %v300 = vsel %vm284, %v233, 0.0
      %v301 = vsel %vm285, %v234, 0.0
      %v302 = vsel %vm286, %v235, 0.0
      %v303 = vsel %vm287, %v236, 0.0
      %v304 = vsel %vm288, %v237, 0.0
      %v305 = vsel %vm289, %v238, 0.0
      %v306 = vsel %vm290, %v239, 0.0
      %v307 = vsel %vm291, %v240, 0.0
      %v308 = vsel %vm292, %v241, 0.0
      %v309 = vsel %vm293, %v242, 0.0
      %v310 = vadd.f32 %v294, %v295
      %v311 = vadd.f32 %v310, %v296
      %v312 = vadd.f32 %v311, %v297
      %v313 = vadd.f32 %v312, %v298
      %v314 = vadd.f32 %v313, %v299
      %v315 = vadd.f32 %v314, %v300
      %v316 = vadd.f32 %v315, %v301
      %v317 = vadd.f32 %v316, %v302
      %v318 = vadd.f32 %v317, %v303
      %v319 = vadd.f32 %v318, %v304
      %v320 = vadd.f32 %v319, %v305
      %v321 = vadd.f32 %v320, %v306
      %v322 = vadd.f32 %v321, %v307
      %v323 = vadd.f32 %v322, %v308
      %v324 = vadd.f32 %v323, %v309
      %v325 = vadd.f32 %v324, 0.0
      %v326 = vadd.f32 %v177, %v325
      %327 = vst [vmem:[#allocation2] sm:$0xff] %v326
    $region29: #{tpu_custom_call.1} parent=1 // pred_fallthru
      _
    // Predicated region
    $region30: #{tpu_custom_call.1} parent=1 // pred_check
      %p328 = pneg %p78
    $region31: #{tpu_custom_call.1} parent=1 // pred_check_branch
      %330 = sbr.rel (%p328) target = $region33
    $region32: #{tpu_custom_call.1} parent=1 // pred_region
      %v331 = vld [vmem:[#allocation2] sm:$0xff]
      %332 = vst [vmem:[#allocation8] sm:$0xff] %v331
    $region33: #{tpu_custom_call.1} parent=1 // pred_fallthru
      _
    // Predicated region
    $region34: #{tpu_custom_call.1} parent=1 // pred_check
      _
    $region35: #{tpu_custom_call.1} parent=1 // pred_check_branch
      %334 = sbr.rel (0) target = $region37
    $region36: #{tpu_custom_call.1} parent=1 // pred_region
      %336 = vsyncadd [#allocation5], 0
      %s338 = sshll.u32 [#allocation8], 4
      %s339 = int_to_ptr.vmem [resolvable:$true] %s338
      %s340 = sshll.u32 %s2, 4
      %s341 = int_to_ptr.hbm [resolvable:$true] %s340
      %343 = dma.vmem_to_hbm [thread:$0]  %s339, 128, %s341, [#allocation5]
    $region37: #{tpu_custom_call.1} parent=1 // pred_fallthru
      _
    // Predicated region
    $region38: #{tpu_custom_call.1} parent=1 // pred_check
      _
    $region39: #{tpu_custom_call.1} parent=1 // pred_check_branch
      %345 = sbr.rel (0) target = $region41
    $region40: #{tpu_custom_call.1} parent=1 // pred_region
      %347 = dma.done [#allocation5], 128
    $region41: #{tpu_custom_call.1} parent=1 // pred_fallthru
      _
    %348 = vsyncpa [#allocation4], 1
    %349 = vsyncpa [#allocation7], 1
    %350 = vsyncpa [#allocation5], 1

</llo_original>
